<compile_context>
chip_gen: v5e
topology: v5e:2x2
jax: 0.10.0
libtpu: 0.0.40
codegen_flags: <defaults>
</compile_context>

<pallas_src>
import functools

import jax
import jax.numpy as jnp
from jax.experimental import pallas as pl
from jax.experimental.pallas import tpu as pltpu

LANE = 1024                  # lane-dense width for the flatten fallback
TARGET_TILE_BYTES = 8 << 20  # ~8 MiB/tile; 2 in + 2 out buffers = 32 MiB
SMALL_BYTES = 1 << 20        # below this: single-block zero-copy fast path
VMEM_LIMIT_BYTES = 48 << 20  # < 64 MiB physical on v7x, << 128 MiB on v5e/v6e


def _cdiv(a, b):
    return -(-a // b)


def _round_up(n, m):
    return _cdiv(n, m) * m


def _sublane(dtype):
    # Native sublane tiling: (8,128) f32, (16,128) bf16, (32,128) int8/fp8.
    return max(8, 32 // jnp.dtype(dtype).itemsize)


def _bias_kernel(alpha_ref, beta_ref, x_ref, o_ref, *, apply_bias):
    # alpha/beta are (1,) f32 scalars in SMEM; scalar math stays off the
    # vector path. Vector math promotes to f32; single cast at the store.
    scale = alpha_ref[0] + jnp.float32(1.0)
    y = x_ref[...] * scale
    if apply_bias:
        y = y + beta_ref[0]
    o_ref[...] = y.astype(o_ref.dtype)


def _call_2d(x2d, alpha, beta, bias, tile_rows):
    """One pallas_call streaming row tiles of a 2-D array."""
    R, C = x2d.shape
    grid = _cdiv(R, tile_rows)
    itemsize = jnp.dtype(x2d.dtype).itemsize
    kernel = functools.partial(_bias_kernel, apply_bias=bool(bias))
    return pl.pallas_call(
        kernel,
        out_shape=jax.ShapeDtypeStruct((R, C), x2d.dtype),
        grid=(grid,),
        in_specs=[
            pl.BlockSpec(memory_space=pltpu.SMEM),            # alpha scalar
            pl.BlockSpec(memory_space=pltpu.SMEM),            # beta scalar
            pl.BlockSpec((tile_rows, C), lambda i: (i, 0)),
        ],
        out_specs=pl.BlockSpec((tile_rows, C), lambda i: (i, 0)),
        compiler_params=pltpu.CompilerParams(
            dimension_semantics=("parallel",),   # shard row tiles across TCs
            vmem_limit_bytes=VMEM_LIMIT_BYTES,
        ),
        cost_estimate=pl.CostEstimate(
            flops=2 * R * C,
            transcendentals=0,
            bytes_accessed=2 * R * C * itemsize,
        ),
    )(alpha, beta, x2d)


def bias_layer_forward(x, alpha, beta, bias=True):
    """Pallas equivalent of BiasLayer.forward.

    x:     arbitrary-shaped float array (logits)
    alpha: [1] float parameter
    beta:  [1] float parameter
    bias:  static python bool (matches the PyTorch `bias=True` kwarg)
    """
    orig_shape = x.shape
    n = x.size
    itemsize = jnp.dtype(x.dtype).itemsize
    sub = _sublane(x.dtype)

    alpha = jnp.asarray(alpha, jnp.float32).reshape(1)
    beta = jnp.asarray(beta, jnp.float32).reshape(1)

    # Normalize to 2-D by collapsing leading dims (layout-preserving).
    if x.ndim == 0:
        x2d = x.reshape(1, 1)
    elif x.ndim == 1:
        x2d = x.reshape(1, n)
    else:
        x2d = x.reshape(-1, x.shape[-1])
    R, C = x2d.shape
    total_bytes = n * itemsize
    row_bytes = C * itemsize

    # --- Fast path: tiny inputs (the shapes this layer actually sees). ------
    # One full-array block, no grid steps, no pad/slice HBM passes. Full-array
    # block dims are exempt from the (sublane, 128) divisibility rule.
    if total_bytes <= SMALL_BYTES:
        out2d = _call_2d(x2d, alpha, beta, bias, tile_rows=R)
        return out2d.reshape(orig_shape)

    # --- Main path: stream the natural 2-D layout, no pad / no slice. -------
    # Row-tile only; the last dim is the full array dim (lane-dense when it is
    # a multiple of 128, masked stores otherwise). Ragged final row block is
    # masked by Pallas, so rows need no padding either.
    if R >= 2 * sub and sub * row_bytes <= TARGET_TILE_BYTES:
        tile_rows = max(sub, (TARGET_TILE_BYTES // row_bytes) // sub * sub)
        # Guarantee >= 2 grid steps so both v7x TensorCores get work.
        tile_rows = min(tile_rows, _round_up(_cdiv(R, 2), sub))
        out2d = _call_2d(x2d, alpha, beta, bias, tile_rows=tile_rows)
        return out2d.reshape(orig_shape)

    # --- Fallback: extreme aspect ratios (a few enormous rows). -------------
    # Flatten to a lane-dense [rows, LANE] slab with minimal sublane padding.
    rows = _cdiv(n, LANE)
    rows_padded = _round_up(rows, sub)
    pad = rows_padded * LANE - n
    x_flat = x.reshape(-1)
    if pad:
        x_flat = jnp.pad(x_flat, (0, pad))
    x2d = x_flat.reshape(rows_padded, LANE)
    tile_rows = max(sub, (TARGET_TILE_BYTES // (LANE * itemsize)) // sub * sub)
    tile_rows = min(tile_rows, _round_up(_cdiv(rows_padded, 2), sub))
    out2d = _call_2d(x2d, alpha, beta, bias, tile_rows=tile_rows)
    out_flat = out2d.reshape(-1)
    if pad:
        out_flat = out_flat[:n]
    return out_flat.reshape(orig_shape)


if __name__ == "__main__":
    key = jax.random.PRNGKey(0)

    # Small logits-like input (the shape BiasLayer actually sees).
    batch, features = 2, 32
    x = jax.random.normal(key, (batch, features), dtype=jnp.float32)
    # PyTorch init: nn.Parameter(torch.zeros(1)) for both -> identity forward.
    alpha = jnp.zeros((1,), dtype=jnp.float32)
    beta = jnp.zeros((1,), dtype=jnp.float32)

    out = bias_layer_forward(x, alpha, beta, bias=True)
    jax.block_until_ready(out)
    ref = (alpha[0] + 1.0) * x + beta[0]
    assert jnp.allclose(out, ref, atol=1e-6), "mismatch vs reference (bias=True)"

    out_nb = bias_layer_forward(x, alpha, beta, bias=False)
    jax.block_until_ready(out_nb)
    assert jnp.allclose(out_nb, (alpha[0] + 1.0) * x, atol=1e-6), \
        "mismatch vs reference (bias=False)"

    alpha2 = jnp.array([0.25], dtype=jnp.float32)
    beta2 = jnp.array([-0.5], dtype=jnp.float32)

    # Mid-size f32 input: natural-2D tiled path (no pad/slice), >= 2 grid steps.
    x_big = jax.random.normal(jax.random.PRNGKey(1), (2048, 640), dtype=jnp.float32)
    out_big = bias_layer_forward(x_big, alpha2, beta2, bias=True)
    jax.block_until_ready(out_big)
    ref_big = (alpha2[0] + 1.0) * x_big + beta2[0]
    assert jnp.allclose(out_big, ref_big, atol=1e-5), "mismatch (tiled f32)"

    # Mid-size bf16 input: exercises dtype-aware (16-sublane) row tiling.
    x_bf = jax.random.normal(jax.random.PRNGKey(2), (1024, 1280),
                             dtype=jnp.bfloat16)
    out_bf = bias_layer_forward(x_bf, alpha2, beta2, bias=True)
    jax.block_until_ready(out_bf)
    ref_bf = ((alpha2[0] + 1.0) * x_bf.astype(jnp.float32) + beta2[0]
              ).astype(jnp.bfloat16)
    assert jnp.allclose(out_bf.astype(jnp.float32), ref_bf.astype(jnp.float32),
                        atol=2e-2, rtol=2e-2), "mismatch (tiled bf16)"

    # Odd small shape: single full-array block fast path (exempt from (8,128)).
    x_odd = jax.random.normal(jax.random.PRNGKey(3), (3, 257, 10),
                              dtype=jnp.float32)
    out_odd = bias_layer_forward(x_odd, alpha2, beta2, bias=True)
    jax.block_until_ready(out_odd)
    ref_odd = (alpha2[0] + 1.0) * x_odd + beta2[0]
    assert jnp.allclose(out_odd, ref_odd, atol=1e-5), "mismatch (small odd shape)"

    # Extreme aspect ratio: exercises the lane-dense flatten fallback.
    x_wide = jax.random.normal(jax.random.PRNGKey(4), (4, 400_000),
                               dtype=jnp.float32)
    out_wide = bias_layer_forward(x_wide, alpha2, beta2, bias=True)
    jax.block_until_ready(out_wide)
    ref_wide = (alpha2[0] + 1.0) * x_wide + beta2[0]
    assert jnp.allclose(out_wide, ref_wide, atol=1e-5), "mismatch (fallback path)"

    print("KERNEL_OK")
</pallas_src>

<mosaic_0001>
module attributes {stable_mosaic.version = 11 : i64} {
  func.func @_bias_kernel(%arg0: i32, %arg1: memref<1xf32, #tpu.memory_space<smem>>, %arg2: memref<1xf32, #tpu.memory_space<smem>>, %arg3: memref<2x32xf32, #tpu.memory_space<vmem>>, %arg4: memref<2x32xf32, #tpu.memory_space<vmem>>) attributes {dimension_semantics = [#tpu.dimension_semantics<parallel>], iteration_bounds = array<i64: 1>, scalar_prefetch = 0 : i64, scratch_operands = 0 : i64, tpu.core_type = #tpu.core_type<tc>, window_params = [{transform_indices = @transform_0, window_bounds = array<i64: 1>}, {transform_indices = @transform_1, window_bounds = array<i64: 1>}, {transform_indices = @transform_2, window_bounds = array<i64: 2, 32>}, {transform_indices = @transform_3, window_bounds = array<i64: 2, 32>}]} {
    %c0 = arith.constant 0 : index
    %0 = memref.load %arg1[%c0] : memref<1xf32, #tpu.memory_space<smem>>
    %cst = arith.constant 1.000000e+00 : f32
    %1 = arith.addf %0, %cst : f32
    %c0_0 = arith.constant 0 : index
    %c0_1 = arith.constant 0 : index
    %2 = vector.load %arg3[%c0_0, %c0_1] : memref<2x32xf32, #tpu.memory_space<vmem>>, vector<2x32xf32>
    %3 = vector.broadcast %1 : f32 to vector<2x32xf32>
    %4 = arith.mulf %2, %3 : vector<2x32xf32>
    %c0_2 = arith.constant 0 : index
    %5 = memref.load %arg2[%c0_2] : memref<1xf32, #tpu.memory_space<smem>>
    %6 = vector.broadcast %5 : f32 to vector<2x32xf32>
    %7 = arith.addf %4, %6 : vector<2x32xf32>
    %c0_3 = arith.constant 0 : index
    %c0_4 = arith.constant 0 : index
    %8 = vector.load %arg4[%c0_3, %c0_4] : memref<2x32xf32, #tpu.memory_space<vmem>>, vector<2x32xf32>
    tpu.vector_store %arg4[%c0_3, %c0_4], %7 {strides = array<i32>} : memref<2x32xf32, #tpu.memory_space<vmem>>, vector<2x32xf32>,
    return
  }
  func.func @transform_0(%arg0: i32) -> i32 {
    %c0_i32 = arith.constant 0 : i32
    %c0_i32_0 = arith.constant 0 : i32
    return %c0_i32 : i32
  }
  func.func @transform_1(%arg0: i32) -> i32 {
    %c0_i32 = arith.constant 0 : i32
    %c0_i32_0 = arith.constant 0 : i32
    return %c0_i32 : i32
  }
  func.func @transform_2(%arg0: i32) -> (i32, i32) {
    %c0_i32 = arith.constant 0 : i32
    %c0_i32_0 = arith.constant 0 : i32
    return %arg0, %c0_i32 : i32, i32
  }
  func.func @transform_3(%arg0: i32) -> (i32, i32) {
    %c0_i32 = arith.constant 0 : i32
    %c0_i32_0 = arith.constant 0 : i32
    return %arg0, %c0_i32 : i32, i32
  }
}

</mosaic_0001>

<llo_original>
// kernel: tpu_custom_call.1
$region0: #{tpu_custom_call.1}
  #allocation0 [shape = 'u32[]', space=smem, size = 0x4, offset = 0x4, fixed_abs, tag = 'smem constant byte address 0x4 - core index']
  #allocation1 [shape = 'u32[72,128]{1,0:T(1,128)}', space=vmem, size = 0x9000, scoped, tag = 'internal scratch']
  #allocation2 [shape = 'f32[1]{0:T(128)S(6)}', space=smem, size = 0x200, scoped, tag = 'scoped memory for tpu_custom_call.1']
  #allocation3 [shape = 'f32[1]{0:T(128)S(6)}', space=smem, size = 0x200, scoped, tag = 'scoped memory for tpu_custom_call.1']
  %s0 = inlined_call_operand.<no memory space> [shape: f32[1], index: 0, kind: input, shape index: {}]
  %s1 = inlined_call_operand.<no memory space> [shape: f32[1], index: 1, kind: input, shape index: {}]
  %s2 = inlined_call_operand.vmem [shape: f32[2,32], index: 2, kind: input, shape index: {}]
  %s3 = inlined_call_operand.hbm [shape: f32[2,32], index: 3, kind: output, shape index: {}]
  %s4 = sld [smem:[#allocation0]]
  $region22: #{tpu_custom_call.1} parent=0
    _
  %s6 = ssub.s32 1, %s4
  %s7 = scalar_select 0, %s6, %s4
  %8 = sst [smem:[#allocation2]] %s0
  %9 = sst [smem:[#allocation3]] %s1
  $region1: #{tpu_custom_call.1} parent=0
    #allocation4 [shape = 'u8[1024]{0}', space=vmem, size = 0x400, scoped, tag = 'output window, operand 0, single buffered']
    #allocation5 [shape = 's32[1]{0}', space=sflag, size = 0x4, scoped, tag = 'scoped memory for tpu_custom_call.1']
    %10 = vsyncpa [#allocation5], 0
    // Predicated region
    $region2: #{tpu_custom_call.1} parent=1 // pred_check
      _
    $region3: #{tpu_custom_call.1} parent=1 // pred_check_branch
      %12 = sbr.rel (0) target = $region5
    $region4: #{tpu_custom_call.1} parent=1 // pred_region
      _
    $region5: #{tpu_custom_call.1} parent=1 // pred_fallthru
      _
    // Predicated region
    $region6: #{tpu_custom_call.1} parent=1 // pred_check
      _
    $region7: #{tpu_custom_call.1} parent=1 // pred_check_branch
      %14 = sbr.rel (0) target = $region9
    $region8: #{tpu_custom_call.1} parent=1 // pred_region
      _
    $region9: #{tpu_custom_call.1} parent=1 // pred_fallthru
      _
    // Predicated region
    $region10: #{tpu_custom_call.1} parent=1 // pred_check
      _
    $region11: #{tpu_custom_call.1} parent=1 // pred_check_branch
      %16 = sbr.rel (0) target = $region13
    $region12: #{tpu_custom_call.1} parent=1 // pred_region
      _
    $region13: #{tpu_custom_call.1} parent=1 // pred_fallthru
      _
    %s17 = sld [smem:[#allocation2]]
    %s18 = sadd.f32 %s17, 1.0
    %v19 = vld [vmem:[%s2] sm:$0x3]
    %v20 = vstv %s18
    %v21 = vmul.f32 %v19, %v20
    %s22 = sld [smem:[#allocation3]]
    %v23 = vstv %s22
    %v24 = vadd.f32 %v21, %v23
    %vm25 = vcmask 254976
    %26 = vst.msk [vmem:[#allocation4] sm:$0x3] %vm25, %v24
    // Predicated region
    $region14: #{tpu_custom_call.1} parent=1 // pred_check
      _
    $region15: #{tpu_custom_call.1} parent=1 // pred_check_branch
      %28 = sbr.rel (0) target = $region17
    $region16: #{tpu_custom_call.1} parent=1 // pred_region
      %30 = vsyncadd [#allocation5], 0
      %s32 = sshll.u32 [#allocation4], 4
      %s33 = int_to_ptr.vmem [resolvable:$true] %s32
      %s34 = sshll.u32 %s3, 4
      %s35 = int_to_ptr.hbm [resolvable:$true] %s34
      %37 = dma.vmem_to_hbm [thread:$0]  %s33, 32, %s35, [#allocation5]
    $region17: #{tpu_custom_call.1} parent=1 // pred_fallthru
      _
    // Predicated region
    $region18: #{tpu_custom_call.1} parent=1 // pred_check
      _
    $region19: #{tpu_custom_call.1} parent=1 // pred_check_branch
      %39 = sbr.rel (0) target = $region21
    $region20: #{tpu_custom_call.1} parent=1 // pred_region
      %41 = dma.done [#allocation5], 32
    $region21: #{tpu_custom_call.1} parent=1 // pred_fallthru
      _
    %42 = vsyncpa [#allocation5], 1

</llo_original>
